<compile_context>
chip_gen: v6e
topology: v6e:2x2x1
jax: 0.10.0
libtpu: 0.0.40
codegen_flags: <defaults>
</compile_context>

<pallas_src>
import functools
import math

import jax
import jax.numpy as jnp
from jax.experimental import pallas as pl
from jax.experimental.pallas import tpu as pltpu


def _no_query_attention_kernel(
    k_ref,      # (Bt * k_len, E)  batch folded into rows
    qx_ref,     # (q_len, H)       precomputed w_q(q) + b_q (batch invariant)
    wk_ref,     # (E, H)
    bk_ref,     # (1, H)
    wp_ref,     # (H, O)
    bp_ref,     # (1, O)
    out_ref,    # (Bt * q_len, O)
    score_ref,  # (Bt * q_len, k_len)
    *,
    bt,
    k_len,
):
    q_len, H = qx_ref.shape

    # w_k(k) for all Bt batches in a single MXU pass (M = Bt * k_len rows).
    kx = jnp.dot(k_ref[...], wk_ref[...],
                 preferred_element_type=jnp.float32) + bk_ref[...]        # (Bt*k_len, H) f32
    kx3 = kx.reshape(bt, k_len, H)                                        # (Bt, k_len, H)
    qx = qx_ref[...].astype(jnp.float32)                                  # (q_len, H)

    if q_len == 1:
        # q_len == 1: score is a per-key dot product with the single query row.
        # VPU multiply + lane reduce; no MXU pass and no kx transpose.
        score = jnp.sum(kx3 * qx.reshape(1, 1, H), axis=-1)               # (Bt, k_len)
        m = jnp.max(score, axis=-1, keepdims=True)
        e = jnp.exp(score - m)
        denom = jnp.sum(e, axis=-1, keepdims=True)
        attn = e * pl.reciprocal(denom, approx=True)                      # (Bt, k_len)
        # context = attn-weighted sum of kx rows (VPU multiply + sublane reduce).
        ctx = jnp.sum(attn[:, :, None] * kx3, axis=1)                     # (Bt, H)
        attn_flat = attn                                                  # (Bt*1, k_len)
    else:
        # General q_len path (not the NoQueryAttention default): batched MXU matmuls.
        qx_b = jnp.broadcast_to(qx[None, :, :], (bt, q_len, H))
        score = jnp.einsum("bqh,bkh->bqk", qx_b, kx3,
                           preferred_element_type=jnp.float32)            # (Bt, q_len, k_len)
        m = jnp.max(score, axis=-1, keepdims=True)
        e = jnp.exp(score - m)
        denom = jnp.sum(e, axis=-1, keepdims=True)
        attn = e * pl.reciprocal(denom, approx=True)
        ctx = jnp.einsum("bqk,bkh->bqh", attn, kx3,
                         preferred_element_type=jnp.float32)
        ctx = ctx.reshape(bt * q_len, H)
        attn_flat = attn.reshape(bt * q_len, k_len)

    # Output projection (n_head == 1, so the torch split/concat is the identity).
    out = jnp.dot(ctx.astype(wp_ref.dtype), wp_ref[...],
                  preferred_element_type=jnp.float32) + bp_ref[...]       # (Bt*q_len, O)

    out_ref[...] = out.astype(out_ref.dtype)
    score_ref[...] = attn_flat.astype(score_ref.dtype)


def no_query_attention(k, q_param, wk, bk, wq, bq, wp, bp, *, block_batch=8):
    """Forward pass of NoQueryAttention (n_head=1, score='dot_product', dropout=0)."""
    B, k_len, E = k.shape
    q_len = q_param.shape[0]
    H = wk.shape[1]
    O = wp.shape[1]

    # Batch-invariant query projection: computed once here, not once per grid step.
    qx = (jnp.dot(q_param, wq, preferred_element_type=jnp.float32)
          + bq.astype(jnp.float32)).reshape(q_len, H)

    # Block several batch elements per grid step; pad the batch to a multiple of Bt.
    bt = min(block_batch, B)
    n_blocks = pl.cdiv(B, bt)
    b_pad = n_blocks * bt
    if b_pad != B:
        k = jnp.concatenate(
            [k, jnp.zeros((b_pad - B, k_len, E), dtype=k.dtype)], axis=0)

    k2d = k.reshape(b_pad * k_len, E)       # batch folded into the matmul M dimension
    bk2 = bk.reshape(1, H)
    bp2 = bp.reshape(1, O)

    out_dtype = k.dtype
    kernel = functools.partial(_no_query_attention_kernel, bt=bt, k_len=k_len)

    out2d, score2d = pl.pallas_call(
        kernel,
        out_shape=(
            jax.ShapeDtypeStruct((b_pad * q_len, O), out_dtype),
            jax.ShapeDtypeStruct((b_pad * q_len, k_len), out_dtype),
        ),
        grid_spec=pltpu.PrefetchScalarGridSpec(
            num_scalar_prefetch=0,
            grid=(n_blocks,),
            in_specs=[
                pl.BlockSpec((bt * k_len, E), lambda b: (b, 0)),
                pl.BlockSpec((q_len, H), lambda b: (0, 0)),
                pl.BlockSpec((E, H), lambda b: (0, 0)),
                pl.BlockSpec((1, H), lambda b: (0, 0)),
                pl.BlockSpec((H, O), lambda b: (0, 0)),
                pl.BlockSpec((1, O), lambda b: (0, 0)),
            ],
            out_specs=[
                pl.BlockSpec((bt * q_len, O), lambda b: (b, 0)),
                pl.BlockSpec((bt * q_len, k_len), lambda b: (b, 0)),
            ],
        ),
        compiler_params=pltpu.CompilerParams(
            dimension_semantics=("parallel",),
        ),
    )(k2d, qx, wk, bk2, wp, bp2)

    out = out2d[: B * q_len].reshape(B, q_len, O)
    score = score2d[: B * q_len].reshape(B, q_len, k_len)
    return out, score


def _reference(k, q_param, wk, bk, wq, bq, wp, bp):
    """Pure-JAX reference replicating the PyTorch forward (n_head=1)."""
    B = k.shape[0]
    q = jnp.broadcast_to(q_param[None, :, :], (B,) + q_param.shape)
    kx = k @ wk + bk
    qx = q @ wq + bq
    score = jnp.einsum("bqh,bkh->bqk", qx, kx)
    score = jax.nn.softmax(score, axis=-1)
    out = jnp.einsum("bqk,bkh->bqh", score, kx)
    out = out @ wp + bp
    return out, score


if __name__ == "__main__":
    # Small shapes: batch=2, k_len=8, embed_dim=32 (hidden_dim=32, out_dim=32, q_len=1).
    B, k_len, E = 2, 8, 32
    H, O, q_len = E, E, 1

    key = jax.random.PRNGKey(0)
    ks = jax.random.split(key, 8)

    # Deterministic parameter init (mimicking the uniform ranges used by PyTorch).
    lin_bound = 1.0 / math.sqrt(E)
    q_bound = 1.0 / math.sqrt(E)
    wk = jax.random.uniform(ks[0], (E, H), jnp.float32, -lin_bound, lin_bound)
    bk = jax.random.uniform(ks[1], (H,), jnp.float32, -lin_bound, lin_bound)
    wq = jax.random.uniform(ks[2], (E, H), jnp.float32, -lin_bound, lin_bound)
    bq = jax.random.uniform(ks[3], (H,), jnp.float32, -lin_bound, lin_bound)
    wp = jax.random.uniform(ks[4], (H, O), jnp.float32, -1.0 / math.sqrt(H), 1.0 / math.sqrt(H))
    bp = jax.random.uniform(ks[5], (O,), jnp.float32, -1.0 / math.sqrt(H), 1.0 / math.sqrt(H))
    q_param = jax.random.uniform(ks[6], (q_len, E), jnp.float32, -q_bound, q_bound)

    # Input k: (B, k_len, embed_dim)
    k_in = jax.random.normal(ks[7], (B, k_len, E), jnp.float32)

    out, score = no_query_attention(k_in, q_param, wk, bk, wq, bq, wp, bp)
    out = jax.block_until_ready(out)
    score = jax.block_until_ready(score)

    # Sanity check against a pure-JAX reference (tolerance covers the EUP approx
    # reciprocal used for the softmax denominator).
    out_ref, score_ref = _reference(k_in, q_param, wk, bk, wq, bq, wp, bp)
    assert out.shape == (B, q_len, O)
    assert score.shape == (B, q_len, k_len)
    assert jnp.allclose(out, out_ref, atol=2e-3, rtol=2e-3)
    assert jnp.allclose(score, score_ref, atol=2e-3, rtol=2e-3)

    print("KERNEL_OK")
</pallas_src>

<mosaic_0001>
module attributes {stable_mosaic.version = 11 : i64} {
  func.func @_no_query_attention_kernel(%arg0: i32, %arg1: memref<16x32xf32, #tpu.memory_space<vmem>>, %arg2: memref<1x32xf32, #tpu.memory_space<vmem>>, %arg3: memref<32x32xf32, #tpu.memory_space<vmem>>, %arg4: memref<1x32xf32, #tpu.memory_space<vmem>>, %arg5: memref<32x32xf32, #tpu.memory_space<vmem>>, %arg6: memref<1x32xf32, #tpu.memory_space<vmem>>, %arg7: memref<2x32xf32, #tpu.memory_space<vmem>>, %arg8: memref<2x8xf32, #tpu.memory_space<vmem>>) attributes {dimension_semantics = [#tpu.dimension_semantics<parallel>], iteration_bounds = array<i64: 1>, scalar_prefetch = 0 : i64, scratch_operands = 0 : i64, tpu.core_type = #tpu.core_type<tc>, window_params = [{transform_indices = @transform_0, window_bounds = array<i64: 16, 32>}, {pipeline_mode = #tpu.pipeline_mode<synchronous>, transform_indices = @transform_1, window_bounds = array<i64: 1, 32>}, {pipeline_mode = #tpu.pipeline_mode<synchronous>, transform_indices = @transform_2, window_bounds = array<i64: 32, 32>}, {pipeline_mode = #tpu.pipeline_mode<synchronous>, transform_indices = @transform_3, window_bounds = array<i64: 1, 32>}, {pipeline_mode = #tpu.pipeline_mode<synchronous>, transform_indices = @transform_4, window_bounds = array<i64: 32, 32>}, {pipeline_mode = #tpu.pipeline_mode<synchronous>, transform_indices = @transform_5, window_bounds = array<i64: 1, 32>}, {transform_indices = @transform_6, window_bounds = array<i64: 2, 32>}, {transform_indices = @transform_7, window_bounds = array<i64: 2, 8>}]} {
    %c0 = arith.constant 0 : index
    %c0_0 = arith.constant 0 : index
    %0 = vector.load %arg1[%c0, %c0_0] : memref<16x32xf32, #tpu.memory_space<vmem>>, vector<16x32xf32>
    %c0_1 = arith.constant 0 : index
    %c0_2 = arith.constant 0 : index
    %1 = vector.load %arg3[%c0_1, %c0_2] : memref<32x32xf32, #tpu.memory_space<vmem>>, vector<32x32xf32>
    %cst = arith.constant dense<0.000000e+00> : vector<16x32xf32>
    %2 = tpu.matmul %0, %1, %cst {dimension_numbers = #tpu.dot_dimension_numbers<[1], [0], [0], [1], [0, 0, 1, 1], [], []>} : vector<16x32xf32>, vector<32x32xf32>, vector<16x32xf32> -> vector<16x32xf32>
    %c0_3 = arith.constant 0 : index
    %c0_4 = arith.constant 0 : index
    %3 = vector.load %arg4[%c0_3, %c0_4] : memref<1x32xf32, #tpu.memory_space<vmem>>, vector<1x32xf32>
    %4 = vector.broadcast %3 : vector<1x32xf32> to vector<16x32xf32>
    %5 = arith.addf %2, %4 : vector<16x32xf32>
    %6 = vector.shape_cast %5 : vector<16x32xf32> to vector<2x8x32xf32>
    %c0_5 = arith.constant 0 : index
    %c0_6 = arith.constant 0 : index
    %7 = vector.load %arg2[%c0_5, %c0_6] : memref<1x32xf32, #tpu.memory_space<vmem>>, vector<1x32xf32>
    %8 = vector.shape_cast %7 : vector<1x32xf32> to vector<1x1x32xf32>
    %9 = vector.broadcast %8 : vector<1x1x32xf32> to vector<2x8x32xf32>
    %10 = arith.mulf %6, %9 : vector<2x8x32xf32>
    %cst_7 = arith.constant dense<0.000000e+00> : vector<2x8xf32>
    %11 = vector.multi_reduction <add>, %10, %cst_7 [2] : vector<2x8x32xf32> to vector<2x8xf32>
    %cst_8 = arith.constant dense<0xFF800000> : vector<2xf32>
    %12 = vector.multi_reduction <maximumf>, %11, %cst_8 [1] : vector<2x8xf32> to vector<2xf32>
    %13 = vector.shape_cast %12 : vector<2xf32> to vector<2x1xf32>
    %14 = vector.broadcast %13 : vector<2x1xf32> to vector<2x8xf32>
    %15 = arith.subf %11, %14 : vector<2x8xf32>
    %16 = math.exp %15 : vector<2x8xf32>
    %cst_9 = arith.constant dense<0.000000e+00> : vector<2xf32>
    %17 = vector.multi_reduction <add>, %16, %cst_9 [1] : vector<2x8xf32> to vector<2xf32>
    %18 = vector.shape_cast %17 : vector<2xf32> to vector<2x1xf32>
    %19 = tpu.reciprocal %18 {approx = true} : vector<2x1xf32> -> vector<2x1xf32>
    %20 = vector.broadcast %19 : vector<2x1xf32> to vector<2x8xf32>
    %21 = arith.mulf %16, %20 : vector<2x8xf32>
    %22 = vector.shape_cast %21 : vector<2x8xf32> to vector<2x8x1xf32>
    %23 = vector.broadcast %22 : vector<2x8x1xf32> to vector<2x8x32xf32>
    %24 = arith.mulf %23, %6 : vector<2x8x32xf32>
    %cst_10 = arith.constant dense<0.000000e+00> : vector<2x32xf32>
    %25 = vector.multi_reduction <add>, %24, %cst_10 [1] : vector<2x8x32xf32> to vector<2x32xf32>
    %c0_11 = arith.constant 0 : index
    %c0_12 = arith.constant 0 : index
    %26 = vector.load %arg5[%c0_11, %c0_12] : memref<32x32xf32, #tpu.memory_space<vmem>>, vector<32x32xf32>
    %cst_13 = arith.constant dense<0.000000e+00> : vector<2x32xf32>
    %27 = tpu.matmul %25, %26, %cst_13 {dimension_numbers = #tpu.dot_dimension_numbers<[1], [0], [0], [1], [0, 0, 1, 1], [], []>} : vector<2x32xf32>, vector<32x32xf32>, vector<2x32xf32> -> vector<2x32xf32>
    %c0_14 = arith.constant 0 : index
    %c0_15 = arith.constant 0 : index
    %28 = vector.load %arg6[%c0_14, %c0_15] : memref<1x32xf32, #tpu.memory_space<vmem>>, vector<1x32xf32>
    %29 = vector.broadcast %28 : vector<1x32xf32> to vector<2x32xf32>
    %30 = arith.addf %27, %29 : vector<2x32xf32>
    %c0_16 = arith.constant 0 : index
    %c0_17 = arith.constant 0 : index
    %31 = vector.load %arg7[%c0_16, %c0_17] : memref<2x32xf32, #tpu.memory_space<vmem>>, vector<2x32xf32>
    tpu.vector_store %arg7[%c0_16, %c0_17], %30 {strides = array<i32>} : memref<2x32xf32, #tpu.memory_space<vmem>>, vector<2x32xf32>,
    %c0_18 = arith.constant 0 : index
    %c0_19 = arith.constant 0 : index
    %32 = vector.load %arg8[%c0_18, %c0_19] : memref<2x8xf32, #tpu.memory_space<vmem>>, vector<2x8xf32>
    tpu.vector_store %arg8[%c0_18, %c0_19], %21 {strides = array<i32>} : memref<2x8xf32, #tpu.memory_space<vmem>>, vector<2x8xf32>,
    return
  }
  func.func @transform_0(%arg0: i32) -> (i32, i32) {
    %c0_i32 = arith.constant 0 : i32
    %c0_i32_0 = arith.constant 0 : i32
    return %arg0, %c0_i32 : i32, i32
  }
  func.func @transform_1(%arg0: i32) -> (i32, i32) {
    %c0_i32 = arith.constant 0 : i32
    %c0_i32_0 = arith.constant 0 : i32
    %c0_i32_1 = arith.constant 0 : i32
    return %c0_i32, %c0_i32_0 : i32, i32
  }
  func.func @transform_2(%arg0: i32) -> (i32, i32) {
    %c0_i32 = arith.constant 0 : i32
    %c0_i32_0 = arith.constant 0 : i32
    %c0_i32_1 = arith.constant 0 : i32
    return %c0_i32, %c0_i32_0 : i32, i32
  }
  func.func @transform_3(%arg0: i32) -> (i32, i32) {
    %c0_i32 = arith.constant 0 : i32
    %c0_i32_0 = arith.constant 0 : i32
    %c0_i32_1 = arith.constant 0 : i32
    return %c0_i32, %c0_i32_0 : i32, i32
  }
  func.func @transform_4(%arg0: i32) -> (i32, i32) {
    %c0_i32 = arith.constant 0 : i32
    %c0_i32_0 = arith.constant 0 : i32
    %c0_i32_1 = arith.constant 0 : i32
    return %c0_i32, %c0_i32_0 : i32, i32
  }
  func.func @transform_5(%arg0: i32) -> (i32, i32) {
    %c0_i32 = arith.constant 0 : i32
    %c0_i32_0 = arith.constant 0 : i32
    %c0_i32_1 = arith.constant 0 : i32
    return %c0_i32, %c0_i32_0 : i32, i32
  }
  func.func @transform_6(%arg0: i32) -> (i32, i32) {
    %c0_i32 = arith.constant 0 : i32
    %c0_i32_0 = arith.constant 0 : i32
    return %arg0, %c0_i32 : i32, i32
  }
  func.func @transform_7(%arg0: i32) -> (i32, i32) {
    %c0_i32 = arith.constant 0 : i32
    %c0_i32_0 = arith.constant 0 : i32
    return %arg0, %c0_i32 : i32, i32
  }
}

</mosaic_0001>

<llo_original>
// kernel: tpu_custom_call.1
$region0: #{tpu_custom_call.1}
  #allocation0 [shape = 'u32[]', space=smem, size = 0x4, offset = 0x4, fixed_abs, tag = 'smem constant byte address 0x4 - core index']
  #allocation1 [shape = 'u32[144,128]{1,0:T(1,128)}', space=vmem, size = 0x12000, scoped, tag = 'internal scratch']
  %s0 = inlined_call_operand.hbm [shape: f32[16,32], index: 0, kind: input, shape index: {}]
  %s1 = inlined_call_operand.vmem [shape: f32[1,32], index: 1, kind: input, shape index: {}]
  %s2 = inlined_call_operand.hbm [shape: f32[32,32], index: 2, kind: input, shape index: {}]
  %s3 = inlined_call_operand.vmem [shape: f32[1,32], index: 3, kind: input, shape index: {}]
  %s4 = inlined_call_operand.hbm [shape: f32[32,32], index: 4, kind: input, shape index: {}]
  %s5 = inlined_call_operand.vmem [shape: f32[1,32], index: 5, kind: input, shape index: {}]
  %s6 = inlined_call_operand.hbm [shape: f32[2,32], index: 6, kind: output, shape index: {0}]
  %s7 = inlined_call_operand.hbm [shape: f32[2,8], index: 7, kind: output, shape index: {1}]
  %8 = xla_tuple %s6, %s7
  %s9 = sld [smem:[#allocation0]]
  $region54: #{tpu_custom_call.1} parent=0
    _
  %s11 = ssub.s32 1, %s9
  %s12 = scalar_select 0, %s11, %s9
  $region1: #{tpu_custom_call.1} parent=0
    #allocation2 [shape = 'u8[8192]{0}', space=vmem, size = 0x2000, scoped, tag = 'input window, operand 0, single buffered']
    #allocation3 [shape = 's32[1]{0}', space=sflag, size = 0x4, scoped, tag = 'scoped memory for tpu_custom_call.1']
    #allocation4 [shape = 's32[1]{0}', space=sflag, size = 0x4, scoped, tag = 'scoped memory for tpu_custom_call.1']
    #allocation5 [shape = 'u8[16384]{0}', space=vmem, size = 0x4000, scoped, tag = 'input window, operand 2, single buffered']
    #allocation6 [shape = 's32[1]{0}', space=sflag, size = 0x4, scoped, tag = 'scoped memory for tpu_custom_call.1']
    #allocation7 [shape = 'u8[16384]{0}', space=vmem, size = 0x4000, scoped, tag = 'input window, operand 4, single buffered']
    #allocation8 [shape = 'u8[1024]{0}', space=vmem, size = 0x400, scoped, tag = 'output window, operand 0, single buffered']
    #allocation9 [shape = 'u8[1024]{0}', space=vmem, size = 0x400, scoped, tag = 'output window, operand 1, single buffered']
    #allocation10 [shape = 's32[1]{0}', space=sflag, size = 0x4, scoped, tag = 'scoped memory for tpu_custom_call.1']
    %13 = vsyncpa [#allocation3], 0
    %14 = vsyncpa [#allocation6], 0
    %15 = vsyncpa [#allocation4], 0
    %16 = vsyncpa [#allocation10], 0
    // Predicated region
    $region2: #{tpu_custom_call.1} parent=1 // pred_check
      _
    $region3: #{tpu_custom_call.1} parent=1 // pred_check_branch
      %18 = sbr.rel (0) target = $region5
    $region4: #{tpu_custom_call.1} parent=1 // pred_region
      %s20 = ssub.s32 256, 256
      %21 = vsyncadd [#allocation3], %s20
      %s22 = sshll.u32 [#allocation2], 4
      %s23 = int_to_ptr.vmem [resolvable:$true] %s22
      %28 = dma.hbm_to_vmem [thread:$0]  %s0, 256, %s23, [#allocation3], 128, 128, 8
    $region5: #{tpu_custom_call.1} parent=1 // pred_fallthru
      _
    // Predicated region
    $region6: #{tpu_custom_call.1} parent=1 // pred_check
      _
    $region7: #{tpu_custom_call.1} parent=1 // pred_check_branch
      %30 = sbr.rel (0) target = $region9
    $region8: #{tpu_custom_call.1} parent=1 // pred_region
      _
    $region9: #{tpu_custom_call.1} parent=1 // pred_fallthru
      _
    // Predicated region
    $region10: #{tpu_custom_call.1} parent=1 // pred_check
      _
    $region11: #{tpu_custom_call.1} parent=1 // pred_check_branch
      %32 = sbr.rel (0) target = $region13
    $region12: #{tpu_custom_call.1} parent=1 // pred_region
      %s34 = ssub.s32 512, 512
      %35 = vsyncadd [#allocation6], %s34
      %s36 = sshll.u32 [#allocation5], 4
      %s37 = int_to_ptr.vmem [resolvable:$true] %s36
      %42 = dma.hbm_to_vmem [thread:$0]  %s2, 512, %s37, [#allocation6], 128, 128, 8
    $region13: #{tpu_custom_call.1} parent=1 // pred_fallthru
      _
    // Predicated region
    $region14: #{tpu_custom_call.1} parent=1 // pred_check
      _
    $region15: #{tpu_custom_call.1} parent=1 // pred_check_branch
      %44 = sbr.rel (0) target = $region17
    $region16: #{tpu_custom_call.1} parent=1 // pred_region
      _
    $region17: #{tpu_custom_call.1} parent=1 // pred_fallthru
      _
    // Predicated region
    $region18: #{tpu_custom_call.1} parent=1 // pred_check
      _
    $region19: #{tpu_custom_call.1} parent=1 // pred_check_branch
      %46 = sbr.rel (0) target = $region21
    $region20: #{tpu_custom_call.1} parent=1 // pred_region
      %s48 = ssub.s32 512, 512
      %49 = vsyncadd [#allocation6], %s48
      %s50 = sshll.u32 [#allocation7], 4
      %s51 = int_to_ptr.vmem [resolvable:$true] %s50
      %56 = dma.hbm_to_vmem [thread:$0]  %s4, 512, %s51, [#allocation6], 128, 128, 8
    $region21: #{tpu_custom_call.1} parent=1 // pred_fallthru
      _
    // Predicated region
    $region22: #{tpu_custom_call.1} parent=1 // pred_check
      _
    $region23: #{tpu_custom_call.1} parent=1 // pred_check_branch
      %58 = sbr.rel (0) target = $region25
    $region24: #{tpu_custom_call.1} parent=1 // pred_region
      _
    $region25: #{tpu_custom_call.1} parent=1 // pred_fallthru
      _
    // Predicated region
    $region26: #{tpu_custom_call.1} parent=1 // pred_check
      _
    $region27: #{tpu_custom_call.1} parent=1 // pred_check_branch
      %60 = sbr.rel (0) target = $region29
    $region28: #{tpu_custom_call.1} parent=1 // pred_region
      %61 = dma.done [#allocation3], 256
    $region29: #{tpu_custom_call.1} parent=1 // pred_fallthru
      _
    // Predicated region
    $region30: #{tpu_custom_call.1} parent=1 // pred_check
      _
    $region31: #{tpu_custom_call.1} parent=1 // pred_check_branch
      %63 = sbr.rel (0) target = $region33
    $region32: #{tpu_custom_call.1} parent=1 // pred_region
      %64 = dma.done [#allocation6], 512
    $region33: #{tpu_custom_call.1} parent=1 // pred_fallthru
      _
    // Predicated region
    $region34: #{tpu_custom_call.1} parent=1 // pred_check
      _
    $region35: #{tpu_custom_call.1} parent=1 // pred_check_branch
      %66 = sbr.rel (0) target = $region37
    $region36: #{tpu_custom_call.1} parent=1 // pred_region
      %67 = dma.done [#allocation6], 512
    $region37: #{tpu_custom_call.1} parent=1 // pred_fallthru
      _
    %v68 = vld [vmem:[#allocation2] sm:$0xff]
    %v69 = vld [vmem:[#allocation2 + $0x8] sm:$0xff]
    %v70 = vld [vmem:[#allocation5] sm:$0xff]
    %v71 = vld [vmem:[#allocation5 + $0x8] sm:$0xff]
    %v72 = vld [vmem:[#allocation5 + $0x10] sm:$0xff]
    %v73 = vld [vmem:[#allocation5 + $0x18] sm:$0xff]
    %v74 = vld [vmem:[%s3] sm:$0x1]
    %v76 = vlaneseq
    %v77 = vshrl.u32 %v76, 7
    %v78 = vsub.s32 0, %v77
    %v79 = vrot.slane %v74, %v78
    %vm81 = vcmask 261120
    %v83 = vsel %vm81, %v68, 0
    %v86 = vsel %vm81, %v69, 0
    %88 = vmatprep.subr.mxu0 0.0
    %89 = vmatpush1.msra.mxu0 0.0
    %90 = vmatprep.subr.mxu0 0.0
    %91 = vmatpush1.msra.mxu0 0.0
    %92 = vmatprep.subr.mxu0 0.0
    %93 = vmatpush1.msra.mxu0 0.0
    %94 = vmatprep.subr.mxu0 0.0
    %95 = vmatpush1.msra.mxu0 0.0
    %96 = vmatprep.subr.mxu0 0.0
    %97 = vmatpush1.msra.mxu0 0.0
    %98 = vmatprep.subr.mxu0 0.0
    %99 = vmatpush1.msra.mxu0 0.0
    %100 = vmatprep.subr.mxu0 0.0
    %101 = vmatpush1.msra.mxu0 0.0
    %102 = vmatprep.subr.mxu0 0.0
    %103 = vmatpush1.msra.mxu0 0.0
    %104 = vmatprep.subr.mxu0 0.0
    %105 = vmatpush1.msra.mxu0 0.0
    %106 = vmatprep.subr.mxu0 0.0
    %107 = vmatpush1.msra.mxu0 0.0
    %108 = vmatprep.subr.mxu0 0.0
    %109 = vmatpush1.msra.mxu0 0.0
    %110 = vmatprep.subr.mxu0 0.0
    %111 = vmatpush1.msra.mxu0 0.0
    %112 = vmatprep.subr.mxu0 0.0
    %113 = vmatpush1.msra.mxu0 %v73
    %114 = vmatprep.subr.mxu0 0.0
    %115 = vmatpush1.msra.mxu0 %v72
    %116 = vmatprep.subr.mxu0 0.0
    %117 = vmatpush1.msra.mxu0 %v71
    %118 = vmatprep.subr.mxu0 0.0
    %119 = vmatpush1.msra.mxu0 %v70
    %120 = vmatprep.subr.mxu0 0.0
    %121 = vmatpush2.msra.mxu0 0.0
    %122 = vmatprep.subr.mxu0 0.0
    %123 = vmatpush2.msra.mxu0 0.0
    %124 = vmatprep.subr.mxu0 0.0
    %125 = vmatpush2.msra.mxu0 0.0
    %126 = vmatprep.subr.mxu0 0.0
    %127 = vmatpush2.msra.mxu0 0.0
    %128 = vmatprep.subr.mxu0 0.0
    %129 = vmatpush2.msra.mxu0 0.0
    %130 = vmatprep.subr.mxu0 0.0
    %131 = vmatpush2.msra.mxu0 0.0
    %132 = vmatprep.subr.mxu0 0.0
    %133 = vmatpush2.msra.mxu0 0.0
    %134 = vmatprep.subr.mxu0 0.0
    %135 = vmatpush2.msra.mxu0 0.0
    %136 = vmatprep.subr.mxu0 0.0
    %137 = vmatpush2.msra.mxu0 0.0
    %138 = vmatprep.subr.mxu0 0.0
    %139 = vmatpush2.msra.mxu0 0.0
    %140 = vmatprep.subr.mxu0 0.0
    %141 = vmatpush2.msra.mxu0 0.0
    %142 = vmatprep.subr.mxu0 0.0
    %143 = vmatpush2.msra.mxu0 0.0
    %144 = vmatprep.subr.mxu0 0.0
    %145 = vmatpush2.msra.mxu0 0.0
    %146 = vmatprep.subr.mxu0 0.0
    %147 = vmatpush2.msra.mxu0 0.0
    %148 = vmatprep.subr.mxu0 0.0
    %149 = vmatpush2.msra.mxu0 0.0
    %150 = vmatprep.subr.mxu0 0.0
    %151 = vmatpush2.msra.mxu0 0.0
    %152 = vmatprep.mubr.f32.mxu0 0.0
    %153 = vmatmul.mubr.f32.gmra.mxu0 %v83
    %v154 = vpop.f32.mrf.mxu0
    %v155 = vadd.f32 %v79, %v154
    %v156 = vpop.f32.mrf.mxu0
    %157 = vmatprep.mubr.f32.mxu0 0.0
    %158 = vmatmul.mubr.f32.gmra.mxu0 %v86
    %v159 = vpop.f32.mrf.mxu0
    %v160 = vadd.f32 %v79, %v159
    %v161 = vpop.f32.mrf.mxu0
    %162 = vdwg.mxu0
    %v163 = vld [vmem:[%s1] sm:$0x1]
    %v165 = vlaneseq
    %v166 = vshrl.u32 %v165, 7
    %v167 = vsub.s32 0, %v166
    %v168 = vrot.slane %v163, %v167
    %v170 = vmul.f32 %v155, %v168
    %v171 = vmul.f32 %v160, %v168
    %v172 = vsel %vm81, %v170, 0.0
    %173 = vadd.xlane.f32.xlu0 %v172
    %v174 = vpop.xlane.xlu0 %173
    %v175 = vsel %vm81, %v171, 0.0
    %176 = vadd.xlane.f32.xlu0 %v175
    %v177 = vpop.xlane.xlu0 %176
    %v180 = vlaneseq
    %v181 = vand.u32 %v180, 127
    %v182 = vlaneseq
    %v183 = vshrl.u32 %v182, 7
    %v184 = vsub.s32 %v181, %v183
    %v185 = vrot.slane %v174, %v184
    %v186 = vlaneseq
    %v187 = vshrl.u32 %v186, 7
    %v188 = vsub.s32 %v181, %v187
    %v189 = vrot.slane %v177, %v188
    %vm190 = vcmask 1041409
    %v191 = vsel %vm190, %v189, %v185
    %vm193 = vcmask 58368
    %v194 = vsel %vm193, %v191, -inf
    %195 = vmax.xlane.f32.xlu0 %v194
    %v196 = vpop.xlane.xlu0 %195
    %v198 = vlaneseq
    %v199 = vshrl.u32 %v198, 7
    %v200 = vsub.s32 0, %v199
    %v201 = vrot.slane %v196, %v200
    %v202 = vlaneseq
    %v203 = vshrl.u32 %v202, 7
    %v204 = vsub.s32 1, %v203
    %v205 = vrot.slane %v196, %v204
    %v208 = vsub.f32 %v174, %v201
    %v209 = vsub.f32 %v177, %v205
    %v210 = vmul.f32 %v208, 1.442695
    %v211 = vpow.pop %v210
    %v212 = vmul.f32 %v209, 1.442695
    %v213 = vpow.pop %v212
    %216 = vset.pattern.permute.xlu0 0
    %217 = vperm.xlu0 %216, %v211
    %v218 = vpop.permute.xlu0 %217
    %219 = vset.pattern.permute.xlu0 0
    %220 = vperm.xlu0 %219, %v213
    %v221 = vpop.permute.xlu0 %220
    %v222 = vlaneseq
    %v223 = vshrl.u32 %v222, 7
    %v224 = vsub.s32 %v181, %v223
    %v225 = vrot.slane %v218, %v224
    %v226 = vlaneseq
    %v227 = vshrl.u32 %v226, 7
    %v228 = vsub.s32 %v181, %v227
    %v229 = vrot.slane %v221, %v228
    %v230 = vsel %vm190, %v229, %v225
    %v232 = vsel %vm193, %v230, 0.0
    %233 = vadd.xlane.f32.xlu0 %v232
    %v234 = vpop.xlane.xlu0 %233
    %v235 = vrcp.pop %v234
    %v237 = vlaneseq
    %v238 = vshrl.u32 %v237, 7
    %v239 = vsub.s32 0, %v238
    %v240 = vrot.slane %v235, %v239
    %v241 = vlaneseq
    %v242 = vshrl.u32 %v241, 7
    %v243 = vsub.s32 1, %v242
    %v244 = vrot.slane %v235, %v243
    %v247 = vmul.f32 %v211, %v240
    %v248 = vmul.f32 %v213, %v244
    %250 = vset.pattern.permute.xlu0 0
    %251 = vperm.xlu0 %250, %v247
    %v252 = vpop.permute.xlu0 %251
    %255 = vset.pattern.permute.xlu0 0
    %256 = vperm.xlu0 %255, %v248
    %v257 = vpop.permute.xlu0 %256
    %v259 = vmul.f32 %v252, %v155
    %v260 = vmul.f32 %v257, %v160
    %v261 = vsel %vm81, %v259, 0.0
    %v262 = vrot.slane %v261, 4
    %v263 = vadd.f32 %v261, %v262
    %v264 = vrot.slane %v263, 2
    %v265 = vadd.f32 %v263, %v264
    %v266 = vrot.slane %v265, 1
    %v267 = vadd.f32 %v265, %v266
    %v268 = vsel %vm81, %v260, 0.0
    %v269 = vrot.slane %v268, 4
    %v270 = vadd.f32 %v268, %v269
    %v271 = vrot.slane %v270, 2
    %v272 = vadd.f32 %v270, %v271
    %v273 = vrot.slane %v272, 1
    %v274 = vadd.f32 %v272, %v273
    %v275 = vld [vmem:[#allocation7] sm:$0xff]
    %v276 = vld [vmem:[#allocation7 + $0x8] sm:$0xff]
    %v277 = vld [vmem:[#allocation7 + $0x10] sm:$0xff]
    %v278 = vld [vmem:[#allocation7 + $0x18] sm:$0xff]
    %v279 = vld [vmem:[%s5] sm:$0x1]
    %v281 = vlaneseq
    %v282 = vshrl.u32 %v281, 7
    %v283 = vsub.s32 0, %v282
    %v284 = vrot.slane %v279, %v283
    %v288 = vsel %vm190, %v274, %v267
    %v289 = vsel %vm81, %v288, 0
    %291 = vmatprep.subr.mxu0 0.0
    %292 = vmatpush1.msra.mxu0 0.0
    %293 = vmatprep.subr.mxu0 0.0
    %294 = vmatpush1.msra.mxu0 0.0
    %295 = vmatprep.subr.mxu0 0.0
    %296 = vmatpush1.msra.mxu0 0.0
    %297 = vmatprep.subr.mxu0 0.0
    %298 = vmatpush1.msra.mxu0 0.0
    %299 = vmatprep.subr.mxu0 0.0
    %300 = vmatpush1.msra.mxu0 0.0
    %301 = vmatprep.subr.mxu0 0.0
    %302 = vmatpush1.msra.mxu0 0.0
    %303 = vmatprep.subr.mxu0 0.0
    %304 = vmatpush1.msra.mxu0 0.0
    %305 = vmatprep.subr.mxu0 0.0
    %306 = vmatpush1.msra.mxu0 0.0
    %307 = vmatprep.subr.mxu0 0.0
    %308 = vmatpush1.msra.mxu0 0.0
    %309 = vmatprep.subr.mxu0 0.0
    %310 = vmatpush1.msra.mxu0 0.0
    %311 = vmatprep.subr.mxu0 0.0
    %312 = vmatpush1.msra.mxu0 0.0
    %313 = vmatprep.subr.mxu0 0.0
    %314 = vmatpush1.msra.mxu0 0.0
    %315 = vmatprep.subr.mxu0 0.0
    %316 = vmatpush1.msra.mxu0 %v278
    %317 = vmatprep.subr.mxu0 0.0
    %318 = vmatpush1.msra.mxu0 %v277
    %319 = vmatprep.subr.mxu0 0.0
    %320 = vmatpush1.msra.mxu0 %v276
    %321 = vmatprep.subr.mxu0 0.0
    %322 = vmatpush1.msra.mxu0 %v275
    %323 = vmatprep.subr.mxu0 0.0
    %324 = vmatpush2.msra.mxu0 0.0
    %325 = vmatprep.subr.mxu0 0.0
    %326 = vmatpush2.msra.mxu0 0.0
    %327 = vmatprep.subr.mxu0 0.0
    %328 = vmatpush2.msra.mxu0 0.0
    %329 = vmatprep.subr.mxu0 0.0
    %330 = vmatpush2.msra.mxu0 0.0
    %331 = vmatprep.subr.mxu0 0.0
    %332 = vmatpush2.msra.mxu0 0.0
    %333 = vmatprep.subr.mxu0 0.0
    %334 = vmatpush2.msra.mxu0 0.0
    %335 = vmatprep.subr.mxu0 0.0
    %336 = vmatpush2.msra.mxu0 0.0
    %337 = vmatprep.subr.mxu0 0.0
    %338 = vmatpush2.msra.mxu0 0.0
    %339 = vmatprep.subr.mxu0 0.0
    %340 = vmatpush2.msra.mxu0 0.0
    %341 = vmatprep.subr.mxu0 0.0
    %342 = vmatpush2.msra.mxu0 0.0
    %343 = vmatprep.subr.mxu0 0.0
    %344 = vmatpush2.msra.mxu0 0.0
    %345 = vmatprep.subr.mxu0 0.0
    %346 = vmatpush2.msra.mxu0 0.0
    %347 = vmatprep.subr.mxu0 0.0
    %348 = vmatpush2.msra.mxu0 0.0
    %349 = vmatprep.subr.mxu0 0.0
    %350 = vmatpush2.msra.mxu0 0.0
    %351 = vmatprep.subr.mxu0 0.0
    %352 = vmatpush2.msra.mxu0 0.0
    %353 = vmatprep.subr.mxu0 0.0
    %354 = vmatpush2.msra.mxu0 0.0
    %355 = vmatprep.mubr.f32.mxu0 0.0
    %356 = vmatmul.mubr.f32.gmra.mxu0 %v289
    %v357 = vpop.f32.mrf.mxu0
    %v358 = vadd.f32 %v284, %v357
    %v359 = vpop.f32.mrf.mxu0
    %360 = vdwg.mxu0
    %vm361 = vcmask 254976
    %362 = vst.msk [vmem:[#allocation8] sm:$0x3] %vm361, %v358
    %v363 = vlaneseq
    %v364 = vshrl.u32 %v363, 7
    %v365 = vsub.s32 %v181, %v364
    %v366 = vrot.slane %v252, %v365
    %v367 = vlaneseq
    %v368 = vshrl.u32 %v367, 7
    %v369 = vsub.s32 %v181, %v368
    %v370 = vrot.slane %v257, %v369
    %v371 = vsel %vm190, %v370, %v366
    %373 = vst.msk [vmem:[#allocation9] sm:$0x3] %vm193, %v371
    // Predicated region
    $region38: #{tpu_custom_call.1} parent=1 // pred_check
      _
    $region39: #{tpu_custom_call.1} parent=1 // pred_check_branch
      %375 = sbr.rel (0) target = $region41
    $region40: #{tpu_custom_call.1} parent=1 // pred_region
      %s377 = ssub.s32 32, 32
      %378 = vsyncadd [#allocation4], %s377
      %s380 = sshll.u32 [#allocation8], 4
      %s381 = int_to_ptr.vmem [resolvable:$true] %s380
      %383 = dma.vmem_to_hbm [thread:$0]  %s381, 32, %s6, [#allocation4]
    $region41: #{tpu_custom_call.1} parent=1 // pred_fallthru
      _
    // Predicated region
    $region42: #{tpu_custom_call.1} parent=1 // pred_check
      _
    $region43: #{tpu_custom_call.1} parent=1 // pred_check_branch
      %385 = sbr.rel (0) target = $region45
    $region44: #{tpu_custom_call.1} parent=1 // pred_region
      %s387 = ssub.s32 32, 32
      %388 = vsyncadd [#allocation10], %s387
      %s390 = sshll.u32 [#allocation9], 4
      %s391 = int_to_ptr.vmem [resolvable:$true] %s390
      %393 = dma.vmem_to_hbm [thread:$0]  %s391, 32, %s7, [#allocation10]
    $region45: #{tpu_custom_call.1} parent=1 // pred_fallthru
      _
    // Predicated region
    $region46: #{tpu_custom_call.1} parent=1 // pred_check
      _
    $region47: #{tpu_custom_call.1} parent=1 // pred_check_branch
      %395 = sbr.rel (0) target = $region49
    $region48: #{tpu_custom_call.1} parent=1 // pred_region
      %396 = dma.done [#allocation4], 32
    $region49: #{tpu_custom_call.1} parent=1 // pred_fallthru
      _
    // Predicated region
    $region50: #{tpu_custom_call.1} parent=1 // pred_check
      _
    $region51: #{tpu_custom_call.1} parent=1 // pred_check_branch
      %398 = sbr.rel (0) target = $region53
    $region52: #{tpu_custom_call.1} parent=1 // pred_region
      %399 = dma.done [#allocation10], 32
    $region53: #{tpu_custom_call.1} parent=1 // pred_fallthru
      _
    %400 = vsyncpa [#allocation3], 1
    %401 = vsyncpa [#allocation6], 1
    %402 = vsyncpa [#allocation4], 1
    %403 = vsyncpa [#allocation10], 1

</llo_original>
